<compile_context>
chip_gen: v7x
topology: tpu7x:2x2x1
jax: 0.10.0
libtpu: 0.0.40
codegen_flags: <defaults>
</compile_context>

<pallas_src>
import functools

import jax
import jax.numpy as jnp
from jax.experimental import pallas as pl
from jax.experimental.pallas import tpu as pltpu


def _normalization_kernel(x_ref, scale_ref, bias_ref, out_ref, *, block_r, resident):
    # x_ref/out_ref: (block_r, block_l) lane-dense data tile.
    # scale_ref/bias_ref: f32 per-row constants, either resident (R_pad, 1)
    # whole-array buffers (sliced here) or pipelined (block_r, 1) blocks.
    if resident:
        i = pl.program_id(0)
        r0 = pl.multiple_of(i * block_r, block_r & -block_r)  # power-of-2 hint
        scale = scale_ref[pl.ds(r0, block_r), :]
        bias = bias_ref[pl.ds(r0, block_r), :]
    else:
        scale = scale_ref[...]
        bias = bias_ref[...]
    x = x_ref[...].astype(jnp.float32)
    out_ref[...] = (x * scale + bias).astype(out_ref.dtype)


def _tile_config():
    """(per-step tile byte target, vmem_limit_bytes or None) by TPU generation."""
    kind = ""
    try:
        kind = jax.devices()[0].device_kind.lower()
    except Exception:
        pass
    if "v7" in kind or "7x" in kind:
        # 3.2 TB/s HBM: 8 MiB tiles keep the ~0.35 us/step overhead <10%.
        # Live set = 2 bufs x (in + out) = 32 MiB -> raise the scoped-VMEM
        # limit explicitly (default 32 MiB, physical 64 MiB).
        return 8 * 1024 * 1024, 48 * 1024 * 1024
    if "v6" in kind:
        # 4 MiB tiles -> 16 MiB live, under the 32 MiB default scoped limit.
        return 4 * 1024 * 1024, None
    # v5e / unknown: 2 MiB tiles -> 8 MiB live fits the 16 MiB default scoped
    # VMEM; HBM is slow enough that step overhead is already <10%.
    return 2 * 1024 * 1024, None


def _lane_block(L, max_block):
    """Largest legal lane block <= max_block; prefer 128-multiple divisors of L."""
    if L <= max_block:
        return L
    d = (min(L, max_block) // 128) * 128
    while d >= 128:
        if L % d == 0:
            return d                       # evenly dividing -> no ragged tail
        d -= 128
    if L < 128:
        return L
    return max(128, (max_block // 128) * 128)  # ragged tail, Pallas masks it


def _select_blocks(R, L, itemsize, target_bytes, row_align):
    """Pick (block_r, block_l): lane-dense, dtype-aligned, within the byte budget."""
    target_elems = max(1, target_bytes // itemsize)
    if R * L <= target_elems:
        return R, L                        # whole array in one step
    rows_fit = target_elems // L
    if rows_fit >= min(R, row_align):
        # Full-width row bands: every DMA is one contiguous HBM slab.
        block_r = R if rows_fit >= R else (rows_fit // row_align) * row_align
        return block_r, L
    # Even one aligned row band is over budget -> split the lane axis too.
    block_r = min(R, row_align)
    block_l = _lane_block(L, max(128, target_elems // block_r))
    return block_r, block_l


def normalization_forward(img, mean, std):
    """(img - mean[:,None,None]) / std[:,None,None] over NCHW input (Pallas TPU)."""
    N, C, H, W = img.shape
    dtype = img.dtype
    itemsize = jnp.dtype(dtype).itemsize

    # Fold (x - mean)/std -> x * scale + bias, computed once in f32 (C values).
    mean_f = jnp.broadcast_to(jnp.asarray(mean, jnp.float32).reshape(-1), (C,))
    std_f = jnp.broadcast_to(jnp.asarray(std, jnp.float32).reshape(-1), (C,))
    scale_c = 1.0 / std_f
    bias_c = -mean_f / std_f

    # Lane-dense 2-D view: one row per (n, c) slab, H*W contiguous along lanes.
    R, L = N * C, H * W
    x2 = img.reshape(R, L)

    # Generation-aware tile sizing + dtype-aware sublane alignment
    # (sub-32-bit dtypes pack rows along sublanes in pairs/quads).
    target_bytes, vmem_limit = _tile_config()
    row_align = {4: 8, 2: 16, 1: 32}.get(itemsize, 8)
    block_r, block_l = _select_blocks(R, L, itemsize, target_bytes, row_align)
    grid = (pl.cdiv(R, block_r), pl.cdiv(L, block_l))

    # Per-row constants (row n*C + c uses channel c), padded so the in-kernel
    # pl.ds(i*block_r, block_r) slice of the resident buffer never runs OOB.
    R_pad = grid[0] * block_r
    scale_rows = jnp.tile(scale_c, N)
    bias_rows = jnp.tile(bias_c, N)
    if R_pad > R:
        scale_rows = jnp.pad(scale_rows, (0, R_pad - R))
        bias_rows = jnp.pad(bias_rows, (0, R_pad - R))
    scale_rows = scale_rows.reshape(R_pad, 1)
    bias_rows = bias_rows.reshape(R_pad, 1)

    # Keep scale/bias VMEM-resident unless N*C is large enough that the
    # lane-padded (R_pad, 128) f32 buffers would eat meaningful VMEM.
    resident = R_pad <= 1024
    if resident:
        sb_spec = pl.BlockSpec((R_pad, 1), lambda i, j: (0, 0))     # fetched once
    else:
        sb_spec = pl.BlockSpec((block_r, 1), lambda i, j: (i, 0))   # pipelined

    compiler_kwargs = dict(dimension_semantics=("parallel", "parallel"))
    if vmem_limit is not None:
        compiler_kwargs["vmem_limit_bytes"] = vmem_limit

    out2 = pl.pallas_call(
        functools.partial(_normalization_kernel, block_r=block_r, resident=resident),
        out_shape=jax.ShapeDtypeStruct((R, L), dtype),
        grid=grid,
        in_specs=[
            pl.BlockSpec((block_r, block_l), lambda i, j: (i, j)),
            sb_spec,
            sb_spec,
        ],
        out_specs=pl.BlockSpec((block_r, block_l), lambda i, j: (i, j)),
        compiler_params=pltpu.CompilerParams(**compiler_kwargs),
        cost_estimate=pl.CostEstimate(
            flops=2 * R * L,
            transcendentals=0,
            bytes_accessed=2 * R * L * itemsize + 2 * R_pad * 4,
        ),
        # Note: pass input_output_aliases={0: 0} if the caller can donate `img`
        # (drops the duplicate HBM output allocation); omitted here because the
        # demo reuses the input for the reference check.
    )(x2, scale_rows, bias_rows)

    return out2.reshape(N, C, H, W)


if __name__ == "__main__":
    key = jax.random.PRNGKey(0)

    # small NCHW image batch
    N, C, H, W = 2, 4, 16, 16
    img = jax.random.uniform(key, (N, C, H, W), dtype=jnp.float32)

    # deterministic per-channel normalization constants (module __init__ args)
    mean = [0.485, 0.456, 0.406, 0.5]
    std = [0.229, 0.224, 0.225, 0.25]

    out = normalization_forward(img, mean, std)
    out = jax.block_until_ready(out)

    # reference check in plain JAX (exact (x - mean)/std form)
    mean_a = jnp.asarray(mean, dtype=jnp.float32)[None, :, None, None]
    std_a = jnp.asarray(std, dtype=jnp.float32)[None, :, None, None]
    ref = (img - mean_a) / std_a
    assert out.shape == (N, C, H, W)
    # x*scale + bias differs from (x-mean)/std by a few ulps (both f32).
    assert jnp.allclose(out, ref, atol=1e-5, rtol=1e-5)

    print("KERNEL_OK")
</pallas_src>

<mosaic_0001>
module attributes {stable_mosaic.version = 11 : i64} {
  func.func @_normalization_kernel(%arg0: i32, %arg1: i32, %arg2: memref<8x256xf32, #tpu.memory_space<vmem>>, %arg3: memref<8x1xf32, #tpu.memory_space<vmem>>, %arg4: memref<8x1xf32, #tpu.memory_space<vmem>>, %arg5: memref<8x256xf32, #tpu.memory_space<vmem>>) attributes {dimension_semantics = [#tpu.dimension_semantics<parallel>, #tpu.dimension_semantics<parallel>], iteration_bounds = array<i64: 1, 1>, scalar_prefetch = 0 : i64, scratch_operands = 0 : i64, tpu.core_type = #tpu.core_type<tc>, window_params = [{transform_indices = @transform_0, window_bounds = array<i64: 8, 256>}, {pipeline_mode = #tpu.pipeline_mode<synchronous>, transform_indices = @transform_1, window_bounds = array<i64: 8, 1>}, {pipeline_mode = #tpu.pipeline_mode<synchronous>, transform_indices = @transform_2, window_bounds = array<i64: 8, 1>}, {transform_indices = @transform_3, window_bounds = array<i64: 8, 256>}]} {
    %c8_i32 = arith.constant 8 : i32
    %0 = arith.muli %arg0, %c8_i32 : i32
    %1 = tpu.assume_multiple %0, 8 : i32
    %2 = arith.index_cast %1 : i32 to index
    %c0 = arith.constant 0 : index
    %3 = vector.load %arg3[%2, %c0] : memref<8x1xf32, #tpu.memory_space<vmem>>, vector<8x1xf32>
    %4 = arith.index_cast %1 : i32 to index
    %c0_0 = arith.constant 0 : index
    %5 = vector.load %arg4[%4, %c0_0] : memref<8x1xf32, #tpu.memory_space<vmem>>, vector<8x1xf32>
    %c0_1 = arith.constant 0 : index
    %c0_2 = arith.constant 0 : index
    %6 = vector.load %arg2[%c0_1, %c0_2] : memref<8x256xf32, #tpu.memory_space<vmem>>, vector<8x256xf32>
    %7 = vector.broadcast %3 : vector<8x1xf32> to vector<8x256xf32>
    %8 = arith.mulf %6, %7 : vector<8x256xf32>
    %9 = vector.broadcast %5 : vector<8x1xf32> to vector<8x256xf32>
    %10 = arith.addf %8, %9 : vector<8x256xf32>
    %c0_3 = arith.constant 0 : index
    %c0_4 = arith.constant 0 : index
    %11 = vector.load %arg5[%c0_3, %c0_4] : memref<8x256xf32, #tpu.memory_space<vmem>>, vector<8x256xf32>
    tpu.vector_store %arg5[%c0_3, %c0_4], %10 {strides = array<i32>} : memref<8x256xf32, #tpu.memory_space<vmem>>, vector<8x256xf32>,
    return
  }
  func.func @transform_0(%arg0: i32, %arg1: i32) -> (i32, i32) {
    %c0_i32 = arith.constant 0 : i32
    return %arg0, %arg1 : i32, i32
  }
  func.func @transform_1(%arg0: i32, %arg1: i32) -> (i32, i32) {
    %c0_i32 = arith.constant 0 : i32
    %c0_i32_0 = arith.constant 0 : i32
    %c0_i32_1 = arith.constant 0 : i32
    return %c0_i32, %c0_i32_0 : i32, i32
  }
  func.func @transform_2(%arg0: i32, %arg1: i32) -> (i32, i32) {
    %c0_i32 = arith.constant 0 : i32
    %c0_i32_0 = arith.constant 0 : i32
    %c0_i32_1 = arith.constant 0 : i32
    return %c0_i32, %c0_i32_0 : i32, i32
  }
  func.func @transform_3(%arg0: i32, %arg1: i32) -> (i32, i32) {
    %c0_i32 = arith.constant 0 : i32
    return %arg0, %arg1 : i32, i32
  }
}

</mosaic_0001>

<llo_original>
// kernel: tpu_custom_call.1
$region0: #{tpu_custom_call.1}
  #allocation0 [shape = 'u32[]', space=smem, size = 0x4, offset = 0x4, fixed_abs, tag = 'smem constant byte address 0x4 - core index']
  #allocation1 [shape = 'u32[144,128]{1,0:T(1,128)}', space=vmem, size = 0x12000, scoped, tag = 'internal scratch']
  %s0 = inlined_call_operand.vmem [shape: f32[8,256], index: 0, kind: input, shape index: {}]
  %s1 = inlined_call_operand.vmem [shape: f32[8,1], index: 1, kind: input, shape index: {}]
  %s2 = inlined_call_operand.vmem [shape: f32[8,1], index: 2, kind: input, shape index: {}]
  %s3 = inlined_call_operand.hbm [shape: f32[8,256], index: 3, kind: output, shape index: {}]
  %s4 = sld [smem:[#allocation0]]
  $region22: #{tpu_custom_call.1} parent=0
    _
  %s6 = ssub.s32 1, %s4
  %s7 = scalar_select 0, %s6, %s4
  $region1: #{tpu_custom_call.1} parent=0
    #allocation2 [shape = 'u8[8192]{0}', space=vmem, size = 0x2000, scoped, tag = 'output window, operand 0, single buffered']
    #allocation3 [shape = 's32[1]{0}', space=sflag, size = 0x4, scoped, tag = 'scoped memory for tpu_custom_call.1']
    %8 = vsyncpa [#allocation3], 0
    // Predicated region
    $region2: #{tpu_custom_call.1} parent=1 // pred_check
      _
    $region3: #{tpu_custom_call.1} parent=1 // pred_check_branch
      %10 = sbr.rel (0) target = $region5
    $region4: #{tpu_custom_call.1} parent=1 // pred_region
      _
    $region5: #{tpu_custom_call.1} parent=1 // pred_fallthru
      _
    // Predicated region
    $region6: #{tpu_custom_call.1} parent=1 // pred_check
      _
    $region7: #{tpu_custom_call.1} parent=1 // pred_check_branch
      %12 = sbr.rel (0) target = $region9
    $region8: #{tpu_custom_call.1} parent=1 // pred_region
      _
    $region9: #{tpu_custom_call.1} parent=1 // pred_fallthru
      _
    // Predicated region
    $region10: #{tpu_custom_call.1} parent=1 // pred_check
      _
    $region11: #{tpu_custom_call.1} parent=1 // pred_check_branch
      %14 = sbr.rel (0) target = $region13
    $region12: #{tpu_custom_call.1} parent=1 // pred_region
      _
    $region13: #{tpu_custom_call.1} parent=1 // pred_fallthru
      _
    %s15 = smul.u32 0, 8
    %s16 = scalar_lea.vmem %s1, %s15
    %v17 = vld [vmem:[%s16] sm:$0xff]
    %s18 = scalar_lea.vmem %s2, %s15
    %v19 = vld [vmem:[%s18] sm:$0xff]
    %v20 = vld [vmem:[%s0] sm:$0xff]
    %v21 = vld [vmem:[%s0 + $0x8] sm:$0xff]
    %23 = vset.pattern.permute.xlu0 0
    %24 = vperm.xlu0 %23, %v17
    %v25 = vpop.permute.xlu0 %24
    %v27 = vmul.f32 %v20, %v25
    %v28 = vmul.f32 %v21, %v25
    %30 = vset.pattern.permute.xlu0 0
    %31 = vperm.xlu0 %30, %v19
    %v32 = vpop.permute.xlu0 %31
    %v34 = vadd.f32 %v27, %v32
    %v35 = vadd.f32 %v28, %v32
    %36 = vst [vmem:[#allocation2] sm:$0xff] %v34
    %37 = vst [vmem:[#allocation2 + $0x8] sm:$0xff] %v35
    // Predicated region
    $region14: #{tpu_custom_call.1} parent=1 // pred_check
      _
    $region15: #{tpu_custom_call.1} parent=1 // pred_check_branch
      %39 = sbr.rel (0) target = $region17
    $region16: #{tpu_custom_call.1} parent=1 // pred_region
      %s41 = ssub.s32 256, 256
      %42 = vsyncadd [#allocation3], %s41
      %s44 = sshll.u32 [#allocation2], 4
      %s45 = int_to_ptr.vmem [resolvable:$true] %s44
      %47 = dma.vmem_to_hbm [thread:$0]  %s45, 256, %s3, [#allocation3]
    $region17: #{tpu_custom_call.1} parent=1 // pred_fallthru
      _
    // Predicated region
    $region18: #{tpu_custom_call.1} parent=1 // pred_check
      _
    $region19: #{tpu_custom_call.1} parent=1 // pred_check_branch
      %49 = sbr.rel (0) target = $region21
    $region20: #{tpu_custom_call.1} parent=1 // pred_region
      %50 = dma.done [#allocation3], 256
    $region21: #{tpu_custom_call.1} parent=1 // pred_fallthru
      _
    %51 = vsyncpa [#allocation3], 1

</llo_original>
